<compile_context>
chip_gen: v7x
topology: tpu7x:2x2x1
jax: 0.10.0
libtpu: 0.0.40
codegen_flags: <defaults>
</compile_context>

<pallas_src>
import math
from functools import partial

import jax
import jax.numpy as jnp
from jax import lax
from jax.experimental import pallas as pl
from jax.experimental.pallas import tpu as pltpu


# ---------------------------------------------------------------------------
# Kernels
# ---------------------------------------------------------------------------

def _layernorm_kernel(x_ref, g_ref, b_ref, o_ref, *, eps, d):
    # x_ref : (tile_rows, D)   g_ref/b_ref : (1, D)   o_ref : (tile_rows, D)
    x = x_ref[...].astype(jnp.float32)
    mean = jnp.mean(x, axis=-1, keepdims=True)
    xc = x - mean
    # torch.Tensor.std(-1) is unbiased (divide by D-1); module uses (std + eps).
    var = jnp.sum(xc * xc, axis=-1, keepdims=True) * (1.0 / (d - 1))
    std = jnp.sqrt(var)
    normed = xc / (std + eps)
    o_ref[...] = (g_ref[...] * normed + b_ref[...]).astype(o_ref.dtype)


def _residual_add_kernel(x_ref, y_ref, o_ref):
    # eval-mode dropout == identity:  out = x + y
    o_ref[...] = x_ref[...] + y_ref[...]


def _mix32(h):
    # murmur3-style finalizer in int32 using logical shifts (sign-safe, wraps on mul).
    h = h ^ lax.shift_right_logical(h, 16)
    h = h * jnp.int32(-2048144789)       # 0x85EBCA6B
    h = h ^ lax.shift_right_logical(h, 13)
    h = h * jnp.int32(-1028477387)       # 0xC2B2AE35
    h = h ^ lax.shift_right_logical(h, 16)
    return h


def _residual_dropout_kernel(seed_ref, x_ref, y_ref, o_ref, *, p, tile_rows, d):
    # training-mode:  out = x + keep_mask * y / (1 - p)
    # Stateless counter-based PRNG: hash(global element index, seed) -> uniform [0,1).
    shape = y_ref.shape
    row = lax.broadcasted_iota(jnp.int32, shape, 0) + pl.program_id(0) * jnp.int32(tile_rows)
    col = lax.broadcasted_iota(jnp.int32, shape, 1)
    idx = row * jnp.int32(d) + col
    h = idx * jnp.int32(-1640531527) + seed_ref[0]     # golden-ratio mix + seed
    h = _mix32(h)
    bits = h & jnp.int32(0xFFFFFF)                     # low 24 bits -> non-negative
    u = bits.astype(jnp.float32) * (1.0 / float(1 << 24))
    keep = u >= p
    scale = 1.0 / (1.0 - p)
    y = y_ref[...].astype(jnp.float32)
    dropped = jnp.where(keep, y * scale, 0.0)
    o_ref[...] = (x_ref[...].astype(jnp.float32) + dropped).astype(o_ref.dtype)


# ---------------------------------------------------------------------------
# Wrappers
# ---------------------------------------------------------------------------

def _round_up(n, m):
    return ((n + m - 1) // m) * m


def _pick_tile_rows(n_rows, max_rows=256):
    # Big row tiles amortize the ~0.35us/step grid overhead; multiple of 8 sublanes.
    return max(8, min(max_rows, _round_up(n_rows, 8)))


def _compiler_params(tile_rows, d, n_tiles_double_buffered):
    tile_bytes = tile_rows * d * 4
    est = 2 * n_tiles_double_buffered * tile_bytes + 4 * d * 4 + (1 << 20)
    vmem = int(min(100 * 1024 * 1024, max(2 * est, 4 * 1024 * 1024)))
    return pltpu.CompilerParams(
        dimension_semantics=("parallel",),
        vmem_limit_bytes=vmem,
    )


def layernorm_pallas(x2d, gamma, beta, *, eps, tile_rows):
    n, d = x2d.shape
    n_pad = _round_up(n, tile_rows)
    if n_pad != n:
        x2d = jnp.pad(x2d, ((0, n_pad - n), (0, 0)))
    g2d = gamma.reshape(1, d).astype(jnp.float32)
    b2d = beta.reshape(1, d).astype(jnp.float32)

    out = pl.pallas_call(
        partial(_layernorm_kernel, eps=eps, d=d),
        out_shape=jax.ShapeDtypeStruct((n_pad, d), jnp.float32),
        grid_spec=pltpu.PrefetchScalarGridSpec(
            num_scalar_prefetch=0,
            grid=(n_pad // tile_rows,),
            in_specs=[
                pl.BlockSpec((tile_rows, d), lambda i: (i, 0)),  # x rows
                pl.BlockSpec((1, d), lambda i: (0, 0)),          # gamma (tiny, constant)
                pl.BlockSpec((1, d), lambda i: (0, 0)),          # beta  (tiny, constant)
            ],
            out_specs=pl.BlockSpec((tile_rows, d), lambda i: (i, 0)),
        ),
        compiler_params=_compiler_params(tile_rows, d, n_tiles_double_buffered=2),
    )(x2d, g2d, b2d)
    return out[:n]


def residual_dropout_pallas(x2d, y2d, *, dropout_p, training, seed, tile_rows):
    n, d = x2d.shape
    n_pad = _round_up(n, tile_rows)
    if n_pad != n:
        pad = ((0, n_pad - n), (0, 0))
        x2d = jnp.pad(x2d, pad)
        y2d = jnp.pad(y2d, pad)

    grid = (n_pad // tile_rows,)
    out_shape = jax.ShapeDtypeStruct((n_pad, d), jnp.float32)
    cparams = _compiler_params(tile_rows, d, n_tiles_double_buffered=3)

    if training and dropout_p > 0.0:
        seed_arr = jnp.asarray([seed], dtype=jnp.int32)
        out = pl.pallas_call(
            partial(_residual_dropout_kernel, p=float(dropout_p),
                    tile_rows=tile_rows, d=d),
            out_shape=out_shape,
            grid_spec=pltpu.PrefetchScalarGridSpec(
                num_scalar_prefetch=1,          # seed lives in SMEM
                grid=grid,
                in_specs=[
                    pl.BlockSpec((tile_rows, d), lambda i, seed_ref: (i, 0)),
                    pl.BlockSpec((tile_rows, d), lambda i, seed_ref: (i, 0)),
                ],
                out_specs=pl.BlockSpec((tile_rows, d), lambda i, seed_ref: (i, 0)),
            ),
            compiler_params=cparams,
        )(seed_arr, x2d, y2d)
    else:
        out = pl.pallas_call(
            _residual_add_kernel,
            out_shape=out_shape,
            grid_spec=pltpu.PrefetchScalarGridSpec(
                num_scalar_prefetch=0,
                grid=grid,
                in_specs=[
                    pl.BlockSpec((tile_rows, d), lambda i: (i, 0)),
                    pl.BlockSpec((tile_rows, d), lambda i: (i, 0)),
                ],
                out_specs=pl.BlockSpec((tile_rows, d), lambda i: (i, 0)),
            ),
            compiler_params=cparams,
        )(x2d, y2d)
    return out[:n]


def sublayer_connection_forward(x, gamma, beta, sublayer, *,
                                eps=1e-6, dropout_p=0.0, training=False,
                                seed=0, max_tile_rows=256):
    """x: (..., d_model). Returns x + dropout(sublayer(LayerNorm(x)))."""
    orig_shape = x.shape
    d = orig_shape[-1]
    x2d = x.reshape(-1, d).astype(jnp.float32)
    n = x2d.shape[0]
    tile_rows = _pick_tile_rows(n, max_tile_rows)

    normed = layernorm_pallas(x2d, gamma, beta, eps=eps, tile_rows=tile_rows)
    # TODO(synk): the sublayer is an arbitrary user callable (attention / FFN / ...);
    # it runs as plain JAX between the two Pallas kernels rather than inside one.
    y = sublayer(normed.reshape(orig_shape))
    y2d = y.reshape(-1, d).astype(jnp.float32)

    out2d = residual_dropout_pallas(x2d, y2d, dropout_p=dropout_p,
                                    training=training, seed=seed,
                                    tile_rows=tile_rows)
    return out2d.reshape(orig_shape)


# ---------------------------------------------------------------------------
# Demo / self-check
# ---------------------------------------------------------------------------

if __name__ == "__main__":
    B, S, D = 2, 8, 128           # lane-dense d_model (multiple of 128)
    dropout_p = 0.1
    eps = 1e-6

    key = jax.random.PRNGKey(0)
    kx, kg, kb, kw = jax.random.split(key, 4)

    x = jax.random.normal(kx, (B, S, D), dtype=jnp.float32)
    gamma = 1.0 + 0.1 * jax.random.normal(kg, (D,), dtype=jnp.float32)
    beta = 0.1 * jax.random.normal(kb, (D,), dtype=jnp.float32)
    W = 0.02 * jax.random.normal(kw, (D, D), dtype=jnp.float32)

    def sublayer(t):
        # stand-in sublayer (e.g. tiny FFN); any JAX callable preserving feature size
        return jnp.tanh(jnp.dot(t, W))

    # ---- eval mode (dropout = identity), checked against a pure-JAX reference ----
    out_eval = sublayer_connection_forward(
        x, gamma, beta, sublayer, eps=eps, dropout_p=dropout_p, training=False)
    out_eval = jax.block_until_ready(out_eval)

    def ref_layernorm(t):
        mean = t.mean(-1, keepdims=True)
        var = jnp.sum((t - mean) ** 2, -1, keepdims=True) / (t.shape[-1] - 1)
        std = jnp.sqrt(var)
        return gamma * (t - mean) / (std + eps) + beta

    y_ref = sublayer(ref_layernorm(x))
    ref_eval = x + y_ref
    assert out_eval.shape == (B, S, D)
    assert jnp.allclose(out_eval, ref_eval, atol=1e-4, rtol=1e-4), \
        float(jnp.max(jnp.abs(out_eval - ref_eval)))

    # ---- training mode (in-kernel stateless-hash dropout): every element is either
    #      kept (residual + y/(1-p)) or dropped (residual only) ----
    out_train = sublayer_connection_forward(
        x, gamma, beta, sublayer, eps=eps, dropout_p=dropout_p,
        training=True, seed=123)
    out_train = jax.block_until_ready(out_train)

    delta = out_train - x
    kept_val = y_ref / (1.0 - dropout_p)
    ok = jnp.isclose(delta, 0.0, atol=1e-3) | jnp.isclose(
        delta, kept_val, atol=1e-3, rtol=1e-3)
    assert out_train.shape == (B, S, D)
    assert bool(jnp.all(ok))
    # sanity: at dropout_p=0.1 some elements must be dropped and most kept
    drop_frac = float(jnp.mean(jnp.isclose(delta, 0.0, atol=1e-3).astype(jnp.float32)))
    assert 0.0 < drop_frac < 0.5, drop_frac

    print("KERNEL_OK")
</pallas_src>

<mosaic_0001>
module attributes {stable_mosaic.version = 11 : i64} {
  func.func @_layernorm_kernel(%arg0: i32, %arg1: memref<16x128xf32, #tpu.memory_space<vmem>>, %arg2: memref<1x128xf32, #tpu.memory_space<vmem>>, %arg3: memref<1x128xf32, #tpu.memory_space<vmem>>, %arg4: memref<16x128xf32, #tpu.memory_space<vmem>>) attributes {dimension_semantics = [#tpu.dimension_semantics<parallel>], iteration_bounds = array<i64: 1>, scalar_prefetch = 0 : i64, scratch_operands = 0 : i64, tpu.core_type = #tpu.core_type<tc>, window_params = [{transform_indices = @transform_0, window_bounds = array<i64: 16, 128>}, {pipeline_mode = #tpu.pipeline_mode<synchronous>, transform_indices = @transform_1, window_bounds = array<i64: 1, 128>}, {pipeline_mode = #tpu.pipeline_mode<synchronous>, transform_indices = @transform_2, window_bounds = array<i64: 1, 128>}, {transform_indices = @transform_3, window_bounds = array<i64: 16, 128>}]} {
    %c0 = arith.constant 0 : index
    %c0_0 = arith.constant 0 : index
    %0 = vector.load %arg1[%c0, %c0_0] : memref<16x128xf32, #tpu.memory_space<vmem>>, vector<16x128xf32>
    %cst = arith.constant dense<0.000000e+00> : vector<16xf32>
    %1 = vector.multi_reduction <add>, %0, %cst [1] : vector<16x128xf32> to vector<16xf32>
    %2 = vector.shape_cast %1 : vector<16xf32> to vector<16x1xf32>
    %cst_1 = arith.constant 1.280000e+02 : f32
    %3 = vector.broadcast %cst_1 : f32 to vector<16x1xf32>
    %4 = arith.divf %2, %3 : vector<16x1xf32>
    %5 = vector.broadcast %4 : vector<16x1xf32> to vector<16x128xf32>
    %6 = arith.subf %0, %5 : vector<16x128xf32>
    %7 = arith.mulf %6, %6 : vector<16x128xf32>
    %cst_2 = arith.constant dense<0.000000e+00> : vector<16xf32>
    %8 = vector.multi_reduction <add>, %7, %cst_2 [1] : vector<16x128xf32> to vector<16xf32>
    %9 = vector.shape_cast %8 : vector<16xf32> to vector<16x1xf32>
    %cst_3 = arith.constant 0.00787401571 : f32
    %10 = vector.broadcast %cst_3 : f32 to vector<16x1xf32>
    %11 = arith.mulf %9, %10 : vector<16x1xf32>
    %12 = math.sqrt %11 : vector<16x1xf32>
    %cst_4 = arith.constant 9.99999997E-7 : f32
    %13 = vector.broadcast %cst_4 : f32 to vector<16x1xf32>
    %14 = arith.addf %12, %13 : vector<16x1xf32>
    %15 = vector.broadcast %14 : vector<16x1xf32> to vector<16x128xf32>
    %16 = arith.divf %6, %15 : vector<16x128xf32>
    %c0_5 = arith.constant 0 : index
    %c0_6 = arith.constant 0 : index
    %17 = vector.load %arg2[%c0_5, %c0_6] : memref<1x128xf32, #tpu.memory_space<vmem>>, vector<1x128xf32>
    %18 = vector.broadcast %17 : vector<1x128xf32> to vector<16x128xf32>
    %19 = arith.mulf %18, %16 : vector<16x128xf32>
    %c0_7 = arith.constant 0 : index
    %c0_8 = arith.constant 0 : index
    %20 = vector.load %arg3[%c0_7, %c0_8] : memref<1x128xf32, #tpu.memory_space<vmem>>, vector<1x128xf32>
    %21 = vector.broadcast %20 : vector<1x128xf32> to vector<16x128xf32>
    %22 = arith.addf %19, %21 : vector<16x128xf32>
    %c0_9 = arith.constant 0 : index
    %c0_10 = arith.constant 0 : index
    %23 = vector.load %arg4[%c0_9, %c0_10] : memref<16x128xf32, #tpu.memory_space<vmem>>, vector<16x128xf32>
    tpu.vector_store %arg4[%c0_9, %c0_10], %22 {strides = array<i32>} : memref<16x128xf32, #tpu.memory_space<vmem>>, vector<16x128xf32>,
    return
  }
  func.func @transform_0(%arg0: i32) -> (i32, i32) {
    %c0_i32 = arith.constant 0 : i32
    %c0_i32_0 = arith.constant 0 : i32
    return %arg0, %c0_i32 : i32, i32
  }
  func.func @transform_1(%arg0: i32) -> (i32, i32) {
    %c0_i32 = arith.constant 0 : i32
    %c0_i32_0 = arith.constant 0 : i32
    %c0_i32_1 = arith.constant 0 : i32
    return %c0_i32, %c0_i32_0 : i32, i32
  }
  func.func @transform_2(%arg0: i32) -> (i32, i32) {
    %c0_i32 = arith.constant 0 : i32
    %c0_i32_0 = arith.constant 0 : i32
    %c0_i32_1 = arith.constant 0 : i32
    return %c0_i32, %c0_i32_0 : i32, i32
  }
  func.func @transform_3(%arg0: i32) -> (i32, i32) {
    %c0_i32 = arith.constant 0 : i32
    %c0_i32_0 = arith.constant 0 : i32
    return %arg0, %c0_i32 : i32, i32
  }
}

</mosaic_0001>

<llo_original>
// kernel: tpu_custom_call.1
$region0: #{tpu_custom_call.1}
  #allocation0 [shape = 'u32[]', space=smem, size = 0x4, offset = 0x4, fixed_abs, tag = 'smem constant byte address 0x4 - core index']
  #allocation1 [shape = 'u32[144,128]{1,0:T(1,128)}', space=vmem, size = 0x12000, scoped, tag = 'internal scratch']
  %s0 = inlined_call_operand.hbm [shape: f32[16,128], index: 0, kind: input, shape index: {}]
  %s1 = inlined_call_operand.vmem [shape: f32[1,128], index: 1, kind: input, shape index: {}]
  %s2 = inlined_call_operand.vmem [shape: f32[1,128], index: 2, kind: input, shape index: {}]
  %s3 = inlined_call_operand.hbm [shape: f32[16,128], index: 3, kind: output, shape index: {}]
  %s4 = sld [smem:[#allocation0]]
  $region26: #{tpu_custom_call.1} parent=0
    _
  %s6 = ssub.s32 1, %s4
  %s7 = scalar_select 0, %s6, %s4
  $region1: #{tpu_custom_call.1} parent=0
    #allocation2 [shape = 'u8[8192]{0}', space=vmem, size = 0x2000, scoped, tag = 'input window, operand 0, single buffered']
    #allocation3 [shape = 's32[1]{0}', space=sflag, size = 0x4, scoped, tag = 'scoped memory for tpu_custom_call.1']
    #allocation4 [shape = 's32[1]{0}', space=sflag, size = 0x4, scoped, tag = 'scoped memory for tpu_custom_call.1']
    #allocation5 [shape = 'u8[8192]{0}', space=vmem, size = 0x2000, scoped, tag = 'output window, operand 0, single buffered']
    %8 = vsyncpa [#allocation3], 0
    %9 = vsyncpa [#allocation4], 0
    // Predicated region
    $region2: #{tpu_custom_call.1} parent=1 // pred_check
      _
    $region3: #{tpu_custom_call.1} parent=1 // pred_check_branch
      %11 = sbr.rel (0) target = $region5
    $region4: #{tpu_custom_call.1} parent=1 // pred_region
      %s13 = ssub.s32 256, 256
      %14 = vsyncadd [#allocation3], %s13
      %s15 = sshll.u32 [#allocation2], 4
      %s16 = int_to_ptr.vmem [resolvable:$true] %s15
      %21 = dma.hbm_to_vmem [thread:$0]  %s0, 256, %s16, [#allocation3], 128, 128, 8
    $region5: #{tpu_custom_call.1} parent=1 // pred_fallthru
      _
    // Predicated region
    $region6: #{tpu_custom_call.1} parent=1 // pred_check
      _
    $region7: #{tpu_custom_call.1} parent=1 // pred_check_branch
      %23 = sbr.rel (0) target = $region9
    $region8: #{tpu_custom_call.1} parent=1 // pred_region
      _
    $region9: #{tpu_custom_call.1} parent=1 // pred_fallthru
      _
    // Predicated region
    $region10: #{tpu_custom_call.1} parent=1 // pred_check
      _
    $region11: #{tpu_custom_call.1} parent=1 // pred_check_branch
      %25 = sbr.rel (0) target = $region13
    $region12: #{tpu_custom_call.1} parent=1 // pred_region
      _
    $region13: #{tpu_custom_call.1} parent=1 // pred_fallthru
      _
    // Predicated region
    $region14: #{tpu_custom_call.1} parent=1 // pred_check
      _
    $region15: #{tpu_custom_call.1} parent=1 // pred_check_branch
      %27 = sbr.rel (0) target = $region17
    $region16: #{tpu_custom_call.1} parent=1 // pred_region
      %28 = dma.done [#allocation3], 256
    $region17: #{tpu_custom_call.1} parent=1 // pred_fallthru
      _
    %v29 = vld [vmem:[#allocation2] sm:$0xff]
    %v30 = vld [vmem:[#allocation2 + $0x8] sm:$0xff]
    %31 = vadd.xlane.f32.xlu0 %v29
    %v32 = vpop.xlane.xlu0 %31
    %33 = vadd.xlane.f32.xlu0 %v30
    %v34 = vpop.xlane.xlu0 %33
    %v35 = vrcp.pop 128.0
    %v36 = vmul.f32 %v32, %v35
    %v37 = vmul.f32 %v34, %v35
    %v38 = vsub.f32 %v29, %v36
    %v39 = vsub.f32 %v30, %v37
    %v40 = vmul.f32 %v38, %v38
    %v41 = vmul.f32 %v39, %v39
    %42 = vadd.xlane.f32.xlu0 %v40
    %v43 = vpop.xlane.xlu0 %42
    %44 = vadd.xlane.f32.xlu0 %v41
    %v45 = vpop.xlane.xlu0 %44
    %v46 = vmul.f32 %v43, 0.007874016
    %v47 = vmul.f32 %v45, 0.007874016
    %v48 = vrsqrt.pop %v46
    %v49 = vmul.f32 %v46, %v48
    %vm50 = vcmp.eq.f32.partialorder %v46, inf
    %v51 = vsel %vm50, %v46, %v49
    %vm52 = vcmp.eq.f32.partialorder %v46, 0.0
    %v53 = vand.u32 %v46, 2147483648
    %v54 = vsel %vm52, %v53, %v51
    %v55 = vrsqrt.pop %v47
    %v56 = vmul.f32 %v47, %v55
    %vm57 = vcmp.eq.f32.partialorder %v47, inf
    %v58 = vsel %vm57, %v47, %v56
    %vm59 = vcmp.eq.f32.partialorder %v47, 0.0
    %v60 = vand.u32 %v47, 2147483648
    %v61 = vsel %vm59, %v60, %v58
    %v62 = vadd.f32 %v54, 1e-06
    %v63 = vadd.f32 %v61, 1e-06
    %v64 = vrcp.pop %v62
    %v65 = vmul.f32 %v38, %v64
    %v66 = vrcp.pop %v63
    %v67 = vmul.f32 %v39, %v66
    %v68 = vld [vmem:[%s1] sm:$0x1]
    %v70 = vlaneseq
    %v71 = vshrl.u32 %v70, 7
    %v72 = vsub.s32 0, %v71
    %v73 = vrot.slane %v68, %v72
    %v75 = vmul.f32 %v73, %v65
    %v76 = vmul.f32 %v73, %v67
    %v77 = vld [vmem:[%s2] sm:$0x1]
    %v79 = vlaneseq
    %v80 = vshrl.u32 %v79, 7
    %v81 = vsub.s32 0, %v80
    %v82 = vrot.slane %v77, %v81
    %v84 = vadd.f32 %v75, %v82
    %v85 = vadd.f32 %v76, %v82
    %86 = vst [vmem:[#allocation5] sm:$0xff] %v84
    %87 = vst [vmem:[#allocation5 + $0x8] sm:$0xff] %v85
    // Predicated region
    $region18: #{tpu_custom_call.1} parent=1 // pred_check
      _
    $region19: #{tpu_custom_call.1} parent=1 // pred_check_branch
      %89 = sbr.rel (0) target = $region21
    $region20: #{tpu_custom_call.1} parent=1 // pred_region
      %s91 = ssub.s32 256, 256
      %92 = vsyncadd [#allocation4], %s91
      %s93 = sshll.u32 [#allocation5], 4
      %s94 = int_to_ptr.vmem [resolvable:$true] %s93
      %99 = dma.vmem_to_hbm [thread:$0]  %s94, 256, %s3, [#allocation4], 128, 128, 8
    $region21: #{tpu_custom_call.1} parent=1 // pred_fallthru
      _
    // Predicated region
    $region22: #{tpu_custom_call.1} parent=1 // pred_check
      _
    $region23: #{tpu_custom_call.1} parent=1 // pred_check_branch
      %101 = sbr.rel (0) target = $region25
    $region24: #{tpu_custom_call.1} parent=1 // pred_region
      %102 = dma.done [#allocation4], 256
    $region25: #{tpu_custom_call.1} parent=1 // pred_fallthru
      _
    %103 = vsyncpa [#allocation3], 1
    %104 = vsyncpa [#allocation4], 1

</llo_original>
